<compile_context>
chip_gen: v7x
topology: tpu7x:2x2x1
jax: 0.10.0
libtpu: 0.0.40
codegen_flags: <defaults>
</compile_context>

<pallas_src>
import functools

import numpy as np
import jax
import jax.numpy as jnp
from jax.experimental import pallas as pl
from jax.experimental.pallas import tpu as pltpu


# ---------------------------------------------------------------------------
# Filter-matrix construction (host-side, once)
# ---------------------------------------------------------------------------
def _lowpass_mask(seq_len: int, ratio: float) -> np.ndarray:
    """Replicates torch.fft.rfftfreq + torch.quantile(linear) + '<' comparison."""
    freqs = np.fft.rfftfreq(seq_len)            # ascending, length seq_len//2+1
    n_f = freqs.shape[0]
    pos = ratio * (n_f - 1)
    lo = int(np.floor(pos))
    hi = min(lo + 1, n_f - 1)
    q = freqs[lo] + (pos - lo) * (freqs[hi] - freqs[lo])
    return (freqs < q).astype(np.float32)


def _filter_matrix(seq_len: int, ratio: float) -> np.ndarray:
    """M s.t. irfft(mask * rfft(x, axis=seq, ortho), ortho) == M @ x along seq."""
    mask = _lowpass_mask(seq_len, ratio)
    eye = np.eye(seq_len, dtype=np.float64)
    spec = np.fft.rfft(eye, axis=0, norm="ortho") * mask[:, None]
    M = np.fft.irfft(spec, n=seq_len, axis=0, norm="ortho")   # real (S, S)
    return M.astype(np.float32)


# ---------------------------------------------------------------------------
# Kernel
# ---------------------------------------------------------------------------
def _filter_layer_kernel(m_ref, x_ref, gamma_ref, beta_ref, o_ref, *,
                         num_layers, matmul_dtype):
    # m_ref:     (S, S)            filter matrix (matmul_dtype)
    # x_ref:     (Bblk, S, H)      activation block, natural (batch, seq, hidden)
    # gamma_ref: (L, H)            per-layer LayerNorm weight (f32)
    # beta_ref:  (L, H)            per-layer LayerNorm bias   (f32)
    # o_ref:     (Bblk, S, H)
    x = x_ref[...].astype(jnp.float32)                     # residual stream (f32)
    bblk = x.shape[0]
    # Broadcast M once, hoisted out of the fused layer loop (JAX does not CSE
    # broadcast_in_dim). Same FLOPs as per-batch M @ x[b]; keeps (b,s,h) layout
    # so no in-kernel transpose / relayout is needed.
    m_b = jnp.broadcast_to(m_ref[...][None], (bblk,) + m_ref.shape)   # (Bblk,S,S)

    def one_layer(layer, x):
        # Spectral low-pass: batched (S,S)@(S,H) on the MXU, f32 accumulation.
        filtered = jnp.einsum(
            "bst,bth->bsh", m_b, x.astype(matmul_dtype),
            preferred_element_type=jnp.float32)             # (Bblk, S, H) f32
        # TODO(synk): training-mode dropout would need pltpu.prng_seed /
        # pltpu.prng_random_bits (identity here == eval mode).
        mean = jnp.mean(filtered, axis=-1, keepdims=True)
        var = jnp.mean(jnp.square(filtered - mean), axis=-1, keepdims=True)
        normed = (filtered - mean) * jax.lax.rsqrt(var + 1e-12)
        g = gamma_ref[pl.ds(layer, 1), :]                   # (1, H)
        b = beta_ref[pl.ds(layer, 1), :]                    # (1, H)
        return normed * g + b + x                           # residual (f32)

    if num_layers <= 4:                                     # small L: static unroll
        for layer in range(num_layers):
            x = one_layer(layer, x)
    else:                                                   # large L: bound live ranges
        x = jax.lax.fori_loop(0, num_layers, one_layer, x)

    o_ref[...] = x.astype(o_ref.dtype)                      # single block store


# ---------------------------------------------------------------------------
# Wrapper helpers
# ---------------------------------------------------------------------------
def _as_layer_params(p, num_layers, hidden):
    p = jnp.asarray(p, jnp.float32).reshape(-1, hidden)
    if p.shape[0] == 1 and num_layers > 1:
        p = jnp.broadcast_to(p, (num_layers, hidden))
    assert p.shape[0] == num_layers
    return p


def _vmem_config(vmem_limit_bytes, vmem_budget_bytes):
    """Per-generation VMEM sizing: v5e/v6e have 128 MiB, v7x 64 MiB per TC."""
    phys = 64 * 1024 * 1024                         # conservative default (v7x)
    try:
        phys = int(pltpu.get_tpu_info().vmem_capacity_bytes)
    except Exception:
        pass
    if phys >= 100 * 1024 * 1024:                   # v5e / v6e (128 MiB)
        limit, budget = 96 * 1024 * 1024, 40 * 1024 * 1024
    else:                                           # v7x (64 MiB per TC)
        limit, budget = 48 * 1024 * 1024, 20 * 1024 * 1024
    if vmem_limit_bytes is None:
        vmem_limit_bytes = limit
    if vmem_budget_bytes is None:
        vmem_budget_bytes = min(budget, vmem_limit_bytes // 2)
    return vmem_limit_bytes, vmem_budget_bytes


def _choose_batch_block(B, S, H, io_itemsize, matmul_itemsize,
                        vmem_budget_bytes, min_grid_steps, max_batch_block):
    """Batch elements per grid step.

    Budget per batch element: double-buffered input + output blocks (io
    dtype), ~5 live f32 slabs inside the fused layer loop, plus one broadcast
    replica of M. Capped so the 1-D grid keeps >= min_grid_steps steps
    (megacore / v7x two-TC sharding).
    """
    per_elem = S * H * (4 * io_itemsize + 5 * 4) + S * S * matmul_itemsize
    bblk = max(1, int(vmem_budget_bytes) // max(1, per_elem))
    if max_batch_block is not None:
        bblk = min(bblk, max_batch_block)
    if min_grid_steps and min_grid_steps > 1:
        bblk = min(bblk, max(1, pl.cdiv(B, min_grid_steps)))
    return max(1, min(bblk, B))


# ---------------------------------------------------------------------------
# Wrapper
# ---------------------------------------------------------------------------
def filter_layer_forward(x, M, gamma, beta, num_layers=1,
                         matmul_dtype=jnp.bfloat16,
                         io_dtype=None,
                         max_batch_block=None,
                         min_grid_steps=2,
                         vmem_limit_bytes=None,
                         vmem_budget_bytes=None):
    """x: (B, S, H). num_layers of spectral filter + LayerNorm + residual.

    Returns (B, S, H) in io_dtype (default: x.dtype). io_dtype=bf16 halves the
    HBM traffic of this bandwidth-bound op.
    """
    B, S, H = x.shape
    io_dtype = x.dtype if io_dtype is None else jnp.dtype(io_dtype)
    gamma2 = _as_layer_params(gamma, num_layers, H)          # (L, H) f32
    beta2 = _as_layer_params(beta, num_layers, H)            # (L, H) f32
    m_in = jnp.asarray(M, matmul_dtype)                      # (S, S)

    vmem_limit_bytes, vmem_budget_bytes = _vmem_config(vmem_limit_bytes,
                                                       vmem_budget_bytes)
    io_itemsize = jnp.dtype(io_dtype).itemsize
    mm_itemsize = jnp.dtype(matmul_dtype).itemsize
    bblk = _choose_batch_block(B, S, H, io_itemsize, mm_itemsize,
                               vmem_budget_bytes, min_grid_steps,
                               max_batch_block)

    x_io = x.astype(io_dtype)
    pad = (-B) % bblk
    if pad:
        x_io = jnp.pad(x_io, ((0, pad), (0, 0), (0, 0)))
    total = B + pad
    grid = (total // bblk,)

    cost = pl.CostEstimate(
        flops=2 * total * S * S * H * num_layers,
        transcendentals=total * S * num_layers,                      # rsqrt
        bytes_accessed=(2 * total * S * H * io_itemsize
                        + S * S * mm_itemsize + 2 * num_layers * H * 4),
    )

    kernel = functools.partial(_filter_layer_kernel,
                               num_layers=num_layers,
                               matmul_dtype=matmul_dtype)

    out = pl.pallas_call(
        kernel,
        out_shape=jax.ShapeDtypeStruct((total, S, H), io_dtype),
        grid_spec=pltpu.PrefetchScalarGridSpec(
            num_scalar_prefetch=0,
            grid=grid,
            in_specs=[
                pl.BlockSpec((S, S), lambda j: (0, 0)),              # M (resident)
                pl.BlockSpec((bblk, S, H), lambda j: (j, 0, 0)),     # activations
                pl.BlockSpec((num_layers, H), lambda j: (0, 0)),     # gamma (resident)
                pl.BlockSpec((num_layers, H), lambda j: (0, 0)),     # beta  (resident)
            ],
            out_specs=pl.BlockSpec((bblk, S, H), lambda j: (j, 0, 0)),
        ),
        compiler_params=pltpu.CompilerParams(
            dimension_semantics=("parallel",),   # shard batch blocks across TCs
            vmem_limit_bytes=vmem_limit_bytes,
        ),
        cost_estimate=cost,
    )(m_in, x_io, gamma2, beta2)

    return out[:B] if pad else out


# ---------------------------------------------------------------------------
# Pure-JAX reference (mirrors the PyTorch forward, eval-mode dropout)
# ---------------------------------------------------------------------------
def _reference(x, gamma, beta, ratio, num_layers=1):
    B, S, H = x.shape
    mask = jnp.asarray(_lowpass_mask(S, ratio))[None, :, None]
    g = _as_layer_params(gamma, num_layers, H)
    b_ = _as_layer_params(beta, num_layers, H)
    for l in range(num_layers):
        fft_x = jnp.fft.rfft(x, axis=1, norm="ortho") * mask
        filtered = jnp.fft.irfft(fft_x, n=S, axis=1, norm="ortho")
        mean = jnp.mean(filtered, axis=-1, keepdims=True)
        var = jnp.mean((filtered - mean) ** 2, axis=-1, keepdims=True)
        normed = (filtered - mean) / jnp.sqrt(var + 1e-12)
        x = normed * g[l] + b_[l] + x
    return x


# ---------------------------------------------------------------------------
# Demo / correctness check
# ---------------------------------------------------------------------------
if __name__ == "__main__":
    batch, seq_len, hidden = 8, 8, 32
    ratio = 0.8

    key = jax.random.PRNGKey(0)
    kx, kg, kb = jax.random.split(key, 3)
    x = jax.random.normal(kx, (batch, seq_len, hidden), dtype=jnp.float32)
    M = jnp.asarray(_filter_matrix(seq_len, ratio))            # (S, S)

    # --- Run 1: exact f32 path, 2 fused layers, forced multi-block grid -------
    L = 2
    gamma = 1.0 + 0.1 * jax.random.normal(kg, (L, hidden), dtype=jnp.float32)
    beta = 0.1 * jax.random.normal(kb, (L, hidden), dtype=jnp.float32)
    out_f32 = filter_layer_forward(x, M, gamma, beta, num_layers=L,
                                   matmul_dtype=jnp.float32, max_batch_block=2)
    out_f32 = jax.block_until_ready(out_f32)
    ref_f32 = _reference(x, gamma, beta, ratio, num_layers=L)
    np.testing.assert_allclose(np.asarray(out_f32), np.asarray(ref_f32),
                               rtol=1e-3, atol=1e-3)

    # --- Run 2: bf16 matmul operands + bf16 activation I/O (mem-bound path) ---
    out_bf16 = filter_layer_forward(x, M, gamma[0], beta[0], num_layers=1,
                                    matmul_dtype=jnp.bfloat16,
                                    io_dtype=jnp.bfloat16)
    out_bf16 = jax.block_until_ready(out_bf16)
    ref_1 = _reference(x, gamma[0], beta[0], ratio, num_layers=1)
    # Tolerance reflects bf16 rounding of matmul operands AND of the
    # activation I/O (accumulation / LN stay f32 in-kernel).
    np.testing.assert_allclose(np.asarray(jnp.asarray(out_bf16, jnp.float32)),
                               np.asarray(ref_1), rtol=7e-2, atol=7e-2)

    print("KERNEL_OK")
</pallas_src>

<mosaic_0001>
module attributes {stable_mosaic.version = 11 : i64} {
  func.func @_filter_layer_kernel(%arg0: i32, %arg1: memref<8x8xf32, #tpu.memory_space<vmem>>, %arg2: memref<2x8x32xf32, #tpu.memory_space<vmem>>, %arg3: memref<2x32xf32, #tpu.memory_space<vmem>>, %arg4: memref<2x32xf32, #tpu.memory_space<vmem>>, %arg5: memref<2x8x32xf32, #tpu.memory_space<vmem>>) attributes {dimension_semantics = [#tpu.dimension_semantics<parallel>], iteration_bounds = array<i64: 4>, scalar_prefetch = 0 : i64, scratch_operands = 0 : i64, tpu.core_type = #tpu.core_type<tc>, window_params = [{pipeline_mode = #tpu.pipeline_mode<synchronous>, transform_indices = @transform_0, window_bounds = array<i64: 8, 8>}, {transform_indices = @transform_1, window_bounds = array<i64: 2, 8, 32>}, {pipeline_mode = #tpu.pipeline_mode<synchronous>, transform_indices = @transform_2, window_bounds = array<i64: 2, 32>}, {pipeline_mode = #tpu.pipeline_mode<synchronous>, transform_indices = @transform_3, window_bounds = array<i64: 2, 32>}, {transform_indices = @transform_4, window_bounds = array<i64: 2, 8, 32>}]} {
    %c0 = arith.constant 0 : index
    %c0_0 = arith.constant 0 : index
    %c0_1 = arith.constant 0 : index
    %0 = vector.load %arg2[%c0, %c0_0, %c0_1] : memref<2x8x32xf32, #tpu.memory_space<vmem>>, vector<2x8x32xf32>
    %c0_2 = arith.constant 0 : index
    %c0_3 = arith.constant 0 : index
    %1 = vector.load %arg1[%c0_2, %c0_3] : memref<8x8xf32, #tpu.memory_space<vmem>>, vector<8x8xf32>
    %2 = vector.shape_cast %1 : vector<8x8xf32> to vector<1x8x8xf32>
    %3 = vector.shape_cast %2 : vector<1x8x8xf32> to vector<1x8x8xf32>
    %4 = vector.broadcast %3 : vector<1x8x8xf32> to vector<2x8x8xf32>
    "tpu.trace_start"() <{level = 10 : i32, message = "bst,bth->bsh"}> : () -> ()
    %cst = arith.constant dense<0.000000e+00> : vector<2x8x32xf32>
    %5 = tpu.matmul %4, %0, %cst {dimension_numbers = #tpu.dot_dimension_numbers<[2], [1], [1], [2], [0, 0, 0, 1, 1, 2], [0], [0]>} : vector<2x8x8xf32>, vector<2x8x32xf32>, vector<2x8x32xf32> -> vector<2x8x32xf32>
    "tpu.trace_stop"() : () -> ()
    %cst_4 = arith.constant dense<0.000000e+00> : vector<2x8xf32>
    %6 = vector.multi_reduction <add>, %5, %cst_4 [2] : vector<2x8x32xf32> to vector<2x8xf32>
    %7 = vector.shape_cast %6 : vector<2x8xf32> to vector<2x8x1xf32>
    %cst_5 = arith.constant 3.200000e+01 : f32
    %8 = vector.broadcast %cst_5 : f32 to vector<2x8x1xf32>
    %9 = arith.divf %7, %8 : vector<2x8x1xf32>
    %10 = vector.broadcast %9 : vector<2x8x1xf32> to vector<2x8x32xf32>
    %11 = arith.subf %5, %10 : vector<2x8x32xf32>
    %12 = arith.mulf %11, %11 : vector<2x8x32xf32>
    %cst_6 = arith.constant dense<0.000000e+00> : vector<2x8xf32>
    %13 = vector.multi_reduction <add>, %12, %cst_6 [2] : vector<2x8x32xf32> to vector<2x8xf32>
    %14 = vector.shape_cast %13 : vector<2x8xf32> to vector<2x8x1xf32>
    %cst_7 = arith.constant 3.200000e+01 : f32
    %15 = vector.broadcast %cst_7 : f32 to vector<2x8x1xf32>
    %16 = arith.divf %14, %15 : vector<2x8x1xf32>
    %17 = vector.broadcast %9 : vector<2x8x1xf32> to vector<2x8x32xf32>
    %18 = arith.subf %5, %17 : vector<2x8x32xf32>
    %cst_8 = arith.constant 9.99999996E-13 : f32
    %19 = vector.broadcast %cst_8 : f32 to vector<2x8x1xf32>
    %20 = arith.addf %16, %19 : vector<2x8x1xf32>
    %21 = math.rsqrt %20 : vector<2x8x1xf32>
    %22 = vector.broadcast %21 : vector<2x8x1xf32> to vector<2x8x32xf32>
    %23 = arith.mulf %18, %22 : vector<2x8x32xf32>
    %c0_9 = arith.constant 0 : index
    %c0_10 = arith.constant 0 : index
    %24 = vector.load %arg3[%c0_9, %c0_10] : memref<2x32xf32, #tpu.memory_space<vmem>>, vector<1x32xf32>
    %c0_11 = arith.constant 0 : index
    %c0_12 = arith.constant 0 : index
    %25 = vector.load %arg4[%c0_11, %c0_12] : memref<2x32xf32, #tpu.memory_space<vmem>>, vector<1x32xf32>
    %26 = vector.shape_cast %24 : vector<1x32xf32> to vector<1x1x32xf32>
    %27 = vector.broadcast %26 : vector<1x1x32xf32> to vector<2x8x32xf32>
    %28 = arith.mulf %23, %27 : vector<2x8x32xf32>
    %29 = vector.shape_cast %25 : vector<1x32xf32> to vector<1x1x32xf32>
    %30 = vector.broadcast %29 : vector<1x1x32xf32> to vector<2x8x32xf32>
    %31 = arith.addf %28, %30 : vector<2x8x32xf32>
    %32 = arith.addf %31, %0 : vector<2x8x32xf32>
    "tpu.trace_start"() <{level = 10 : i32, message = "bst,bth->bsh"}> : () -> ()
    %cst_13 = arith.constant dense<0.000000e+00> : vector<2x8x32xf32>
    %33 = tpu.matmul %4, %32, %cst_13 {dimension_numbers = #tpu.dot_dimension_numbers<[2], [1], [1], [2], [0, 0, 0, 1, 1, 2], [0], [0]>} : vector<2x8x8xf32>, vector<2x8x32xf32>, vector<2x8x32xf32> -> vector<2x8x32xf32>
    "tpu.trace_stop"() : () -> ()
    %cst_14 = arith.constant dense<0.000000e+00> : vector<2x8xf32>
    %34 = vector.multi_reduction <add>, %33, %cst_14 [2] : vector<2x8x32xf32> to vector<2x8xf32>
    %35 = vector.shape_cast %34 : vector<2x8xf32> to vector<2x8x1xf32>
    %cst_15 = arith.constant 3.200000e+01 : f32
    %36 = vector.broadcast %cst_15 : f32 to vector<2x8x1xf32>
    %37 = arith.divf %35, %36 : vector<2x8x1xf32>
    %38 = vector.broadcast %37 : vector<2x8x1xf32> to vector<2x8x32xf32>
    %39 = arith.subf %33, %38 : vector<2x8x32xf32>
    %40 = arith.mulf %39, %39 : vector<2x8x32xf32>
    %cst_16 = arith.constant dense<0.000000e+00> : vector<2x8xf32>
    %41 = vector.multi_reduction <add>, %40, %cst_16 [2] : vector<2x8x32xf32> to vector<2x8xf32>
    %42 = vector.shape_cast %41 : vector<2x8xf32> to vector<2x8x1xf32>
    %cst_17 = arith.constant 3.200000e+01 : f32
    %43 = vector.broadcast %cst_17 : f32 to vector<2x8x1xf32>
    %44 = arith.divf %42, %43 : vector<2x8x1xf32>
    %45 = vector.broadcast %37 : vector<2x8x1xf32> to vector<2x8x32xf32>
    %46 = arith.subf %33, %45 : vector<2x8x32xf32>
    %cst_18 = arith.constant 9.99999996E-13 : f32
    %47 = vector.broadcast %cst_18 : f32 to vector<2x8x1xf32>
    %48 = arith.addf %44, %47 : vector<2x8x1xf32>
    %49 = math.rsqrt %48 : vector<2x8x1xf32>
    %50 = vector.broadcast %49 : vector<2x8x1xf32> to vector<2x8x32xf32>
    %51 = arith.mulf %46, %50 : vector<2x8x32xf32>
    %c1 = arith.constant 1 : index
    %c0_19 = arith.constant 0 : index
    %52 = vector.load %arg3[%c1, %c0_19] : memref<2x32xf32, #tpu.memory_space<vmem>>, vector<1x32xf32>
    %c1_20 = arith.constant 1 : index
    %c0_21 = arith.constant 0 : index
    %53 = vector.load %arg4[%c1_20, %c0_21] : memref<2x32xf32, #tpu.memory_space<vmem>>, vector<1x32xf32>
    %54 = vector.shape_cast %52 : vector<1x32xf32> to vector<1x1x32xf32>
    %55 = vector.broadcast %54 : vector<1x1x32xf32> to vector<2x8x32xf32>
    %56 = arith.mulf %51, %55 : vector<2x8x32xf32>
    %57 = vector.shape_cast %53 : vector<1x32xf32> to vector<1x1x32xf32>
    %58 = vector.broadcast %57 : vector<1x1x32xf32> to vector<2x8x32xf32>
    %59 = arith.addf %56, %58 : vector<2x8x32xf32>
    %60 = arith.addf %59, %32 : vector<2x8x32xf32>
    %c0_22 = arith.constant 0 : index
    %c0_23 = arith.constant 0 : index
    %c0_24 = arith.constant 0 : index
    %61 = vector.load %arg5[%c0_22, %c0_23, %c0_24] : memref<2x8x32xf32, #tpu.memory_space<vmem>>, vector<2x8x32xf32>
    tpu.vector_store %arg5[%c0_22, %c0_23, %c0_24], %60 {strides = array<i32>} : memref<2x8x32xf32, #tpu.memory_space<vmem>>, vector<2x8x32xf32>,
    return
  }
  func.func @transform_0(%arg0: i32) -> (i32, i32) {
    %c0_i32 = arith.constant 0 : i32
    %c0_i32_0 = arith.constant 0 : i32
    %c0_i32_1 = arith.constant 0 : i32
    return %c0_i32, %c0_i32_0 : i32, i32
  }
  func.func @transform_1(%arg0: i32) -> (i32, i32, i32) {
    %c0_i32 = arith.constant 0 : i32
    %c0_i32_0 = arith.constant 0 : i32
    %c0_i32_1 = arith.constant 0 : i32
    return %arg0, %c0_i32, %c0_i32_0 : i32, i32, i32
  }
  func.func @transform_2(%arg0: i32) -> (i32, i32) {
    %c0_i32 = arith.constant 0 : i32
    %c0_i32_0 = arith.constant 0 : i32
    %c0_i32_1 = arith.constant 0 : i32
    return %c0_i32, %c0_i32_0 : i32, i32
  }
  func.func @transform_3(%arg0: i32) -> (i32, i32) {
    %c0_i32 = arith.constant 0 : i32
    %c0_i32_0 = arith.constant 0 : i32
    %c0_i32_1 = arith.constant 0 : i32
    return %c0_i32, %c0_i32_0 : i32, i32
  }
  func.func @transform_4(%arg0: i32) -> (i32, i32, i32) {
    %c0_i32 = arith.constant 0 : i32
    %c0_i32_0 = arith.constant 0 : i32
    %c0_i32_1 = arith.constant 0 : i32
    return %arg0, %c0_i32, %c0_i32_0 : i32, i32, i32
  }
}

</mosaic_0001>

<llo_original>
// kernel: tpu_custom_call.1
$region0: #{tpu_custom_call.1}
  #allocation0 [shape = 'u32[]', space=smem, size = 0x4, offset = 0x4, fixed_abs, tag = 'smem constant byte address 0x4 - core index']
  #allocation1 [shape = 'u32[144,128]{1,0:T(1,128)}', space=vmem, size = 0x12000, scoped, tag = 'internal scratch']
  %s0 = inlined_call_operand.hbm [shape: f32[8,8], index: 0, kind: input, shape index: {}]
  %s1 = inlined_call_operand.hbm [shape: f32[8,8,32], index: 1, kind: input, shape index: {}]
  %s2 = inlined_call_operand.vmem [shape: f32[2,32], index: 2, kind: input, shape index: {}]
  %s3 = inlined_call_operand.vmem [shape: f32[2,32], index: 3, kind: input, shape index: {}]
  %s4 = inlined_call_operand.hbm [shape: f32[8,8,32], index: 4, kind: output, shape index: {}]
  %s5 = sld [smem:[#allocation0]]
  $region57: #{tpu_custom_call.1} parent=0
    _
  %s7 = ssub.s32 1, %s5
  %s8 = scalar_select 0, %s7, %s5
  $region1: #{tpu_custom_call.1} parent=0
    #allocation2 [shape = 'u8[4096]{0}', space=vmem, size = 0x1000, scoped, tag = 'input window, operand 0, single buffered']
    #allocation3 [shape = 's32[2]{0}', space=sflag, size = 0x8, scoped, tag = 'scoped memory for tpu_custom_call.1']
    #allocation4 [shape = 's32[2]{0}', space=sflag, size = 0x8, scoped, tag = 'scoped memory for tpu_custom_call.1']
    #allocation5 [shape = 'u8[16384]{0}', space=vmem, size = 0x4000, scoped, tag = 'input window, operand 1']
    #allocation6 [shape = 's32[2]{0}', space=sflag, size = 0x8, scoped, tag = 'scoped memory for tpu_custom_call.1']
    #allocation7 [shape = 'u8[16384]{0}', space=vmem, size = 0x4000, scoped, tag = 'output window, operand 0']
    %9 = vsyncpa [#allocation3], 0
    %10 = vsyncpa [#allocation6], 0
    %s11 = scalar_lea.sflag [#allocation6], 1
    %12 = vsyncpa %s11, 0
    %13 = vsyncpa [#allocation4], 0
    %s14 = scalar_lea.sflag [#allocation4], 1
    %15 = vsyncpa %s14, 0
    loop: start=0, step=1, limit=6
    $region2: #{tpu_custom_call.1} parent=1 // loop_pre_header
      _
    $region3: #{tpu_custom_call.1} parent=1 // loop_header
      %s17 = sphi 0, %s21
      %p18 = scmp.ge.s32.totalorder %s17, 6
      %s25 = sphi 0, %s25
      %s27 = sphi 0, %s25
      %s28 = sphi 0, %s27
      %s42 = sphi 0, %s28
      %s48 = sphi 0, %s50
      %s51 = sphi 0, %s48
      %s52 = sphi 0, %s51
      %s68 = sphi 0, %s52
      %s72 = sphi 0, %s72
      %s74 = sphi 0, %s72
      %s75 = sphi 0, %s74
      %s89 = sphi 0, %s75
      %s93 = sphi 0, %s93
      %s95 = sphi 0, %s93
      %s96 = sphi 0, %s95
      %s110 = sphi 0, %s96
      %s116 = sphi 0, %s118
      %s119 = sphi 0, %s116
      %s120 = sphi 0, %s119
      %s136 = sphi 0, %s120
    $region4: #{tpu_custom_call.1} parent=1 // loop_header_branch
      %20 = sbr.rel (%p18) target = $region8
    $region5: #{tpu_custom_call.1} parent=1 // loop_body
      %s22 = ssub.s32 %s17, 1
      %s23 = ssub.s32 %s17, 2
      %s24 = sadd.s32 %s17, 1
      %s26 = sadd.s32 %s25, 1
      %p29 = scmp.eq.s32.totalorder %s17, 3
      %p30 = scmp.ne.s32.totalorder %s25, %s27
      %p31 = scmp.eq.s32.totalorder %s17, 0
      %p32 = por %p30, %p31
      %p33 = scmp.ne.s32.totalorder %s25, %s27
      %p34 = scmp.eq.s32.totalorder %s22, 3
      %p35 = por %p33, %p34
      %p36 = scmp.ne.s32.totalorder %s27, %s28
      %p37 = scmp.eq.s32.totalorder %s22, 0
      %p38 = por %p36, %p37
      %p39 = scmp.ne.s32.totalorder %s27, %s28
      %p40 = scmp.eq.s32.totalorder %s23, 3
      %p41 = por %p39, %p40
      %p43 = scmp.ne.s32.totalorder %s28, %s42
      %p44 = scmp.eq.s32.totalorder %s23, 0
      %p45 = por %p43, %p44
      %s46 = ssub.s32 %s17, %s24
      %p47 = scmp.eq.s32.totalorder %s46, 0
      %s49 = sadd.s32 %s48, 1
      %s50 = scalar_select %p47, %s48, %s49
      %p53 = pneg %p47
      %p54 = scmp.eq.s32.totalorder %s17, 3
      %p55 = por %p53, %p54
      %p56 = scmp.ne.s32.totalorder %s48, %s51
      %p57 = scmp.eq.s32.totalorder %s17, 0
      %p58 = por %p56, %p57
      %p59 = scmp.ne.s32.totalorder %s48, %s51
      %p60 = scmp.eq.s32.totalorder %s22, 3
      %p61 = por %p59, %p60
      %p62 = scmp.ne.s32.totalorder %s51, %s52
      %p63 = scmp.eq.s32.totalorder %s22, 0
      %p64 = por %p62, %p63
      %p65 = scmp.ne.s32.totalorder %s51, %s52
      %p66 = scmp.eq.s32.totalorder %s23, 3
      %p67 = por %p65, %p66
      %p69 = scmp.ne.s32.totalorder %s52, %s68
      %p70 = scmp.eq.s32.totalorder %s23, 0
      %p71 = por %p69, %p70
      %s73 = sadd.s32 %s72, 1
      %p76 = scmp.eq.s32.totalorder %s17, 3
      %p77 = scmp.ne.s32.totalorder %s72, %s74
      %p78 = scmp.eq.s32.totalorder %s17, 0
      %p79 = por %p77, %p78
      %p80 = scmp.ne.s32.totalorder %s72, %s74
      %p81 = scmp.eq.s32.totalorder %s22, 3
      %p82 = por %p80, %p81
      %p83 = scmp.ne.s32.totalorder %s74, %s75
      %p84 = scmp.eq.s32.totalorder %s22, 0
      %p85 = por %p83, %p84
      %p86 = scmp.ne.s32.totalorder %s74, %s75
      %p87 = scmp.eq.s32.totalorder %s23, 3
      %p88 = por %p86, %p87
      %p90 = scmp.ne.s32.totalorder %s75, %s89
      %p91 = scmp.eq.s32.totalorder %s23, 0
      %p92 = por %p90, %p91
      %s94 = sadd.s32 %s93, 1
      %p97 = scmp.eq.s32.totalorder %s17, 3
      %p98 = scmp.ne.s32.totalorder %s93, %s95
      %p99 = scmp.eq.s32.totalorder %s17, 0
      %p100 = por %p98, %p99
      %p101 = scmp.ne.s32.totalorder %s93, %s95
      %p102 = scmp.eq.s32.totalorder %s22, 3
      %p103 = por %p101, %p102
      %p104 = scmp.ne.s32.totalorder %s95, %s96
      %p105 = scmp.eq.s32.totalorder %s22, 0
      %p106 = por %p104, %p105
      %p107 = scmp.ne.s32.totalorder %s95, %s96
      %p108 = scmp.eq.s32.totalorder %s23, 3
      %p109 = por %p107, %p108
      %p111 = scmp.ne.s32.totalorder %s96, %s110
      %p112 = scmp.eq.s32.totalorder %s23, 0
      %p113 = por %p111, %p112
      %s114 = ssub.s32 %s17, %s24
      %p115 = scmp.eq.s32.totalorder %s114, 0
      %s117 = sadd.s32 %s116, 1
      %s118 = scalar_select %p115, %s116, %s117
      %p121 = pneg %p115
      %p122 = scmp.eq.s32.totalorder %s17, 3
      %p123 = por %p121, %p122
      %p124 = scmp.ne.s32.totalorder %s116, %s119
      %p125 = scmp.eq.s32.totalorder %s17, 0
      %p126 = por %p124, %p125
      %p127 = scmp.ne.s32.totalorder %s116, %s119
      %p128 = scmp.eq.s32.totalorder %s22, 3
      %p129 = por %p127, %p128
      %p130 = scmp.ne.s32.totalorder %s119, %s120
      %p131 = scmp.eq.s32.totalorder %s22, 0
      %p132 = por %p130, %p131
      %p133 = scmp.ne.s32.totalorder %s119, %s120
      %p134 = scmp.eq.s32.totalorder %s23, 3
      %p135 = por %p133, %p134
      %p137 = scmp.ne.s32.totalorder %s120, %s136
      %p138 = scmp.eq.s32.totalorder %s23, 0
      %p139 = por %p137, %p138
      %p140 = scmp.le.s32.totalorder 1, %s17
      %p141 = scmp.lt.s32.totalorder %s17, 5
      %p142 = pnand %p140, %p141
      %p143 = pneg %p142
      // Predicated region
      $region9: #{tpu_custom_call.1} parent=5 // pred_check
        _
      $region10: #{tpu_custom_call.1} parent=5 // pred_check_branch
        %145 = sbr.rel (%p142) target = $region12
      $region11: #{tpu_custom_call.1} parent=5 // pred_region
        %s146 = ssub.s32 %s17, 1
        // Predicated region
        $region13: #{tpu_custom_call.1} parent=11 // pred_check
          %p147 = pneg %p38
        $region14: #{tpu_custom_call.1} parent=11 // pred_check_branch
          %149 = sbr.rel (%p147) target = $region16
        $region15: #{tpu_custom_call.1} parent=11 // pred_region
          %s151 = ssub.s32 128, 128
          %152 = vsyncadd [#allocation3], %s151
          %s154 = sshll.u32 [#allocation2], 4
          %s155 = int_to_ptr.vmem [resolvable:$true] %s154
          %157 = dma.hbm_to_vmem [thread:$0]  %s0, 128, %s155, [#allocation3]
        $region16: #{tpu_custom_call.1} parent=11 // pred_fallthru
          _
        // Predicated region
        $region17: #{tpu_custom_call.1} parent=11 // pred_check
          %p158 = pneg %p85
        $region18: #{tpu_custom_call.1} parent=11 // pred_check_branch
          %160 = sbr.rel (%p158) target = $region20
        $region19: #{tpu_custom_call.1} parent=11 // pred_region
          _
        $region20: #{tpu_custom_call.1} parent=11 // pred_fallthru
          _
        // Predicated region
        $region21: #{tpu_custom_call.1} parent=11 // pred_check
          %p161 = pneg %p106
        $region22: #{tpu_custom_call.1} parent=11 // pred_check_branch
          %163 = sbr.rel (%p161) target = $region24
        $region23: #{tpu_custom_call.1} parent=11 // pred_region
          _
        $region24: #{tpu_custom_call.1} parent=11 // pred_fallthru
          _
      $region12: #{tpu_custom_call.1} parent=5 // pred_fallthru
        _
      %p164 = scmp.lt.s32.totalorder %s17, 4
      // Predicated region
      $region25: #{tpu_custom_call.1} parent=5 // pred_check
        %p165 = pneg %p164
      $region26: #{tpu_custom_call.1} parent=5 // pred_check_branch
        %167 = sbr.rel (%p165) target = $region28
      $region27: #{tpu_custom_call.1} parent=5 // pred_region
        // Predicated region
        $region29: #{tpu_custom_call.1} parent=27 // pred_check
          %p168 = pneg %p58
        $region30: #{tpu_custom_call.1} parent=27 // pred_check_branch
          %170 = sbr.rel (%p168) target = $region32
        $region31: #{tpu_custom_call.1} parent=27 // pred_region
          %s171 = sand.u32 %s48, 1
          %s172 = scalar_lea.sflag [#allocation6], %s171
          %s173 = sand.u32 %s48, 1
          %s174 = smul.addr %s173, 16
          %s175 = scalar_lea.vmem [#allocation5], %s174
          %s176 = smul.u32 2, %s17
          %s178 = ssub.s32 256, 256
          %179 = vsyncadd %s172, %s178
          %s180 = smul.addr %s176, 128
          %s181 = scalar_lea.hbm %s1, %s180
          %s182 = sshll.u32 %s175, 4
          %s183 = int_to_ptr.vmem [resolvable:$true] %s182
          %188 = dma.hbm_to_vmem [thread:$0]  %s181, 256, %s183, %s172, 128, 128, 8
        $region32: #{tpu_custom_call.1} parent=27 // pred_fallthru
          _
      $region28: #{tpu_custom_call.1} parent=5 // pred_fallthru
        _
      %p189 = scmp.le.s32.totalorder 1, %s17
      %p190 = scmp.lt.s32.totalorder %s17, 5
      %p191 = pnand %p189, %p190
      %p192 = pneg %p191
      // Predicated region
      $region33: #{tpu_custom_call.1} parent=5 // pred_check
        _
      $region34: #{tpu_custom_call.1} parent=5 // pred_check_branch
        %194 = sbr.rel (%p191) target = $region36
      $region35: #{tpu_custom_call.1} parent=5 // pred_region
        %s195 = ssub.s32 %s17, 1
        // Predicated region
        $region37: #{tpu_custom_call.1} parent=35 // pred_check
          %p196 = pneg %p38
        $region38: #{tpu_custom_call.1} parent=35 // pred_check_branch
          %198 = sbr.rel (%p196) target = $region40
        $region39: #{tpu_custom_call.1} parent=35 // pred_region
          %199 = dma.done [#allocation3], 128
        $region40: #{tpu_custom_call.1} parent=35 // pred_fallthru
          _
        %s200 = sand.u32 %s51, 1
        %s201 = scalar_lea.sflag [#allocation6], %s200
        %s202 = sand.u32 %s51, 1
        %s203 = smul.addr %s202, 16
        %s204 = scalar_lea.vmem [#allocation5], %s203
        // Predicated region
        $region41: #{tpu_custom_call.1} parent=35 // pred_check
          %p205 = pneg %p64
        $region42: #{tpu_custom_call.1} parent=35 // pred_check_branch
          %207 = sbr.rel (%p205) target = $region44
        $region43: #{tpu_custom_call.1} parent=35 // pred_region
          %208 = dma.done %s201, 256
        $region44: #{tpu_custom_call.1} parent=35 // pred_fallthru
          _
        %p209 = pneg %p38
        %p210 = pneg %p35
        %s211 = sand.u32 %s51, 1
        %s212 = scalar_lea.sflag [#allocation6], %s211
        %s213 = sand.u32 %s51, 1
        %s214 = smul.addr %s213, 16
        %s215 = scalar_lea.vmem [#allocation5], %s214
        %p216 = pneg %p64
        %p217 = pneg %p61
        %p218 = pneg %p85
        %p219 = pneg %p82
        %p220 = pneg %p106
        %p221 = pneg %p103
        %p222 = pneg %p132
        %p223 = pneg %p129
        %s224 = sand.u32 %s119, 1
        %s225 = scalar_lea.sflag [#allocation4], %s224
        %s226 = sand.u32 %s119, 1
        %s227 = smul.addr %s226, 16
        %s228 = scalar_lea.vmem [#allocation7], %s227
        %s229 = smul.u32 2, %s22
        %s230 = smul.u32 2, %s22
        %v231 = vld [vmem:[%s204] sm:$0xff]
        %v232 = vld [vmem:[%s204 + $0x8] sm:$0xff]
        %v233 = vld [vmem:[#allocation2] sm:$0xff]
        %vm234 = vcmask 64512
        %v236 = vsel %vm234, %v233, 0
        %238 = vmatprep.subr.mxu0 0.0
        %239 = vmatpush1.msra.mxu0 %v231
        %240 = vmatprep.subr.mxu0 0.0
        %241 = vmatpush1.msra.mxu0 0.0
        %242 = vmatprep.subr.mxu0 0.0
        %243 = vmatpush1.msra.mxu0 0.0
        %244 = vmatprep.subr.mxu0 0.0
        %245 = vmatpush1.msra.mxu0 0.0
        %246 = vmatprep.subr.mxu0 0.0
        %247 = vmatpush1.msra.mxu0 0.0
        %248 = vmatprep.subr.mxu0 0.0
        %249 = vmatpush1.msra.mxu0 0.0
        %250 = vmatprep.subr.mxu0 0.0
        %251 = vmatpush1.msra.mxu0 0.0
        %252 = vmatprep.subr.mxu0 0.0
        %253 = vmatpush1.msra.mxu0 0.0
        %254 = vmatprep.subr.mxu0 0.0
        %255 = vmatpush1.msra.mxu0 0.0
        %256 = vmatprep.subr.mxu0 0.0
        %257 = vmatpush1.msra.mxu0 0.0
        %258 = vmatprep.subr.mxu0 0.0
        %259 = vmatpush1.msra.mxu0 0.0
        %260 = vmatprep.subr.mxu0 0.0
        %261 = vmatpush1.msra.mxu0 0.0
        %262 = vmatprep.subr.mxu0 0.0
        %263 = vmatpush1.msra.mxu0 0.0
        %264 = vmatprep.subr.mxu0 0.0
        %265 = vmatpush1.msra.mxu0 0.0
        %266 = vmatprep.subr.mxu0 0.0
        %267 = vmatpush1.msra.mxu0 0.0
        %268 = vmatprep.subr.mxu0 0.0
        %269 = vmatpush1.msra.mxu0 0.0
        %270 = vmatprep.subr.mxu0 0.0
        %271 = vmatpush1.msra.mxu0 0.0
        %272 = vmatprep.subr.mxu0 0.0
        %273 = vmatpush1.msra.mxu0 0.0
        %274 = vmatprep.subr.mxu0 0.0
        %275 = vmatpush1.msra.mxu0 0.0
        %276 = vmatprep.subr.mxu0 0.0
        %277 = vmatpush1.msra.mxu0 0.0
        %278 = vmatprep.subr.mxu0 0.0
        %279 = vmatpush1.msra.mxu0 0.0
        %280 = vmatprep.subr.mxu0 0.0
        %281 = vmatpush1.msra.mxu0 0.0
        %282 = vmatprep.subr.mxu0 0.0
        %283 = vmatpush1.msra.mxu0 0.0
        %284 = vmatprep.subr.mxu0 0.0
        %285 = vmatpush1.msra.mxu0 0.0
        %286 = vmatprep.subr.mxu0 0.0
        %287 = vmatpush1.msra.mxu0 0.0
        %288 = vmatprep.subr.mxu0 0.0
        %289 = vmatpush1.msra.mxu0 0.0
        %290 = vmatprep.subr.mxu0 0.0
        %291 = vmatpush1.msra.mxu0 0.0
        %292 = vmatprep.subr.mxu0 0.0
        %293 = vmatpush1.msra.mxu0 0.0
        %294 = vmatprep.subr.mxu0 0.0
        %295 = vmatpush1.msra.mxu0 0.0
        %296 = vmatprep.subr.mxu0 0.0
        %297 = vmatpush1.msra.mxu0 0.0
        %298 = vmatprep.subr.mxu0 0.0
        %299 = vmatpush1.msra.mxu0 0.0
        %300 = vmatprep.subr.mxu0 0.0
        %301 = vmatpush1.msra.mxu0 0.0
        %302 = vmatprep.mubr.f32.mxu0 0.0
        %303 = vmatmul.mubr.f32.gmra.mrb[0].mxu0 %v236
        %v304 = vpop.f32.mrb[0].mxu0
        %v305 = vadd.f32 0.0, %v304
        %v306 = vpop.f32.mrb[0].mxu0
        %307 = vdwg.mxu0
        %308 = vmatprep.subr.mxu0 0.0
        %309 = vmatpush1.msra.mxu0 %v232
        %310 = vmatprep.subr.mxu0 0.0
        %311 = vmatpush1.msra.mxu0 0.0
        %312 = vmatprep.subr.mxu0 0.0
        %313 = vmatpush1.msra.mxu0 0.0
        %314 = vmatprep.subr.mxu0 0.0
        %315 = vmatpush1.msra.mxu0 0.0
        %316 = vmatprep.subr.mxu0 0.0
        %317 = vmatpush1.msra.mxu0 0.0
        %318 = vmatprep.subr.mxu0 0.0
        %319 = vmatpush1.msra.mxu0 0.0
        %320 = vmatprep.subr.mxu0 0.0
        %321 = vmatpush1.msra.mxu0 0.0
        %322 = vmatprep.subr.mxu0 0.0
        %323 = vmatpush1.msra.mxu0 0.0
        %324 = vmatprep.subr.mxu0 0.0
        %325 = vmatpush1.msra.mxu0 0.0
        %326 = vmatprep.subr.mxu0 0.0
        %327 = vmatpush1.msra.mxu0 0.0
        %328 = vmatprep.subr.mxu0 0.0
        %329 = vmatpush1.msra.mxu0 0.0
        %330 = vmatprep.subr.mxu0 0.0
        %331 = vmatpush1.msra.mxu0 0.0
        %332 = vmatprep.subr.mxu0 0.0
        %333 = vmatpush1.msra.mxu0 0.0
        %334 = vmatprep.subr.mxu0 0.0
        %335 = vmatpush1.msra.mxu0 0.0
        %336 = vmatprep.subr.mxu0 0.0
        %337 = vmatpush1.msra.mxu0 0.0
        %338 = vmatprep.subr.mxu0 0.0
        %339 = vmatpush1.msra.mxu0 0.0
        %340 = vmatprep.subr.mxu0 0.0
        %341 = vmatpush1.msra.mxu0 0.0
        %342 = vmatprep.subr.mxu0 0.0
        %343 = vmatpush1.msra.mxu0 0.0
        %344 = vmatprep.subr.mxu0 0.0
        %345 = vmatpush1.msra.mxu0 0.0
        %346 = vmatprep.subr.mxu0 0.0
        %347 = vmatpush1.msra.mxu0 0.0
        %348 = vmatprep.subr.mxu0 0.0
        %349 = vmatpush1.msra.mxu0 0.0
        %350 = vmatprep.subr.mxu0 0.0
        %351 = vmatpush1.msra.mxu0 0.0
        %352 = vmatprep.subr.mxu0 0.0
        %353 = vmatpush1.msra.mxu0 0.0
        %354 = vmatprep.subr.mxu0 0.0
        %355 = vmatpush1.msra.mxu0 0.0
        %356 = vmatprep.subr.mxu0 0.0
        %357 = vmatpush1.msra.mxu0 0.0
        %358 = vmatprep.subr.mxu0 0.0
        %359 = vmatpush1.msra.mxu0 0.0
        %360 = vmatprep.subr.mxu0 0.0
        %361 = vmatpush1.msra.mxu0 0.0
        %362 = vmatprep.subr.mxu0 0.0
        %363 = vmatpush1.msra.mxu0 0.0
        %364 = vmatprep.subr.mxu0 0.0
        %365 = vmatpush1.msra.mxu0 0.0
        %366 = vmatprep.subr.mxu0 0.0
        %367 = vmatpush1.msra.mxu0 0.0
        %368 = vmatprep.subr.mxu0 0.0
        %369 = vmatpush1.msra.mxu0 0.0
        %370 = vmatprep.subr.mxu0 0.0
        %371 = vmatpush1.msra.mxu0 0.0
        %372 = vmatprep.mubr.f32.mxu0 0.0
        %373 = vmatmul.mubr.f32.gmra.mrb[0].mxu0 %v236
        %v374 = vpop.f32.mrb[0].mxu0
        %v375 = vadd.f32 0.0, %v374
        %v376 = vpop.f32.mrb[0].mxu0
        %377 = vdwg.mxu0
        %vm378 = vcmask 261120
        %v379 = vsel %vm378, %v305, 0.0
        %380 = vadd.xlane.f32.xlu0 %v379
        %v381 = vpop.xlane.xlu0 %380
        %v382 = vsel %vm378, %v375, 0.0
        %383 = vadd.xlane.f32.xlu0 %v382
        %v384 = vpop.xlane.xlu0 %383
        %v385 = vrcp.pop 32.0
        %v386 = vmul.f32 %v381, %v385
        %v387 = vmul.f32 %v384, %v385
        %v388 = vsub.f32 %v305, %v386
        %v389 = vsub.f32 %v375, %v387
        %v390 = vmul.f32 %v388, %v388
        %v391 = vmul.f32 %v389, %v389
        %v392 = vsel %vm378, %v390, 0.0
        %393 = vadd.xlane.f32.xlu0 %v392
        %v394 = vpop.xlane.xlu0 %393
        %v395 = vsel %vm378, %v391, 0.0
        %396 = vadd.xlane.f32.xlu0 %v395
        %v397 = vpop.xlane.xlu0 %396
        %v398 = vmul.f32 %v394, %v385
        %v399 = vmul.f32 %v397, %v385
        %v400 = vadd.f32 %v398, 1e-12
        %v401 = vadd.f32 %v399, 1e-12
        %v402 = vrsqrt.pop %v400
        %v403 = vrsqrt.pop %v401
        %v404 = vmul.f32 %v388, %v402
        %v405 = vmul.f32 %v389, %v403
        %v406 = vld [vmem:[%s2] sm:$0x1]
        %v407 = vld [vmem:[%s3] sm:$0x1]
        %v408 = vlaneseq
        %v409 = vshrl.u32 %v408, 7
        %v410 = vsub.s32 0, %v409
        %v411 = vrot.slane %v406, %v410
        %v412 = vmul.f32 %v404, %v411
        %v413 = vmul.f32 %v405, %v411
        %v414 = vlaneseq
        %v415 = vshrl.u32 %v414, 7
        %v416 = vsub.s32 0, %v415
        %v417 = vrot.slane %v407, %v416
        %v418 = vadd.f32 %v412, %v417
        %v419 = vadd.f32 %v413, %v417
        %v420 = vadd.f32 %v418, %v231
        %v421 = vadd.f32 %v419, %v232
        %422 = vmatprep.subr.mxu0 0.0
        %423 = vmatpush1.msra.mxu0 %v420
        %424 = vmatprep.subr.mxu0 0.0
        %425 = vmatpush1.msra.mxu0 0.0
        %426 = vmatprep.subr.mxu0 0.0
        %427 = vmatpush1.msra.mxu0 0.0
        %428 = vmatprep.subr.mxu0 0.0
        %429 = vmatpush1.msra.mxu0 0.0
        %430 = vmatprep.subr.mxu0 0.0
        %431 = vmatpush1.msra.mxu0 0.0
        %432 = vmatprep.subr.mxu0 0.0
        %433 = vmatpush1.msra.mxu0 0.0
        %434 = vmatprep.subr.mxu0 0.0
        %435 = vmatpush1.msra.mxu0 0.0
        %436 = vmatprep.subr.mxu0 0.0
        %437 = vmatpush1.msra.mxu0 0.0
        %438 = vmatprep.subr.mxu0 0.0
        %439 = vmatpush1.msra.mxu0 0.0
        %440 = vmatprep.subr.mxu0 0.0
        %441 = vmatpush1.msra.mxu0 0.0
        %442 = vmatprep.subr.mxu0 0.0
        %443 = vmatpush1.msra.mxu0 0.0
        %444 = vmatprep.subr.mxu0 0.0
        %445 = vmatpush1.msra.mxu0 0.0
        %446 = vmatprep.subr.mxu0 0.0
        %447 = vmatpush1.msra.mxu0 0.0
        %448 = vmatprep.subr.mxu0 0.0
        %449 = vmatpush1.msra.mxu0 0.0
        %450 = vmatprep.subr.mxu0 0.0
        %451 = vmatpush1.msra.mxu0 0.0
        %452 = vmatprep.subr.mxu0 0.0
        %453 = vmatpush1.msra.mxu0 0.0
        %454 = vmatprep.subr.mxu0 0.0
        %455 = vmatpush1.msra.mxu0 0.0
        %456 = vmatprep.subr.mxu0 0.0
        %457 = vmatpush1.msra.mxu0 0.0
        %458 = vmatprep.subr.mxu0 0.0
        %459 = vmatpush1.msra.mxu0 0.0
        %460 = vmatprep.subr.mxu0 0.0
        %461 = vmatpush1.msra.mxu0 0.0
        %462 = vmatprep.subr.mxu0 0.0
        %463 = vmatpush1.msra.mxu0 0.0
        %464 = vmatprep.subr.mxu0 0.0
        %465 = vmatpush1.msra.mxu0 0.0
        %466 = vmatprep.subr.mxu0 0.0
        %467 = vmatpush1.msra.mxu0 0.0
        %468 = vmatprep.subr.mxu0 0.0
        %469 = vmatpush1.msra.mxu0 0.0
        %470 = vmatprep.subr.mxu0 0.0
        %471 = vmatpush1.msra.mxu0 0.0
        %472 = vmatprep.subr.mxu0 0.0
        %473 = vmatpush1.msra.mxu0 0.0
        %474 = vmatprep.subr.mxu0 0.0
        %475 = vmatpush1.msra.mxu0 0.0
        %476 = vmatprep.subr.mxu0 0.0
        %477 = vmatpush1.msra.mxu0 0.0
        %478 = vmatprep.subr.mxu0 0.0
        %479 = vmatpush1.msra.mxu0 0.0
        %480 = vmatprep.subr.mxu0 0.0
        %481 = vmatpush1.msra.mxu0 0.0
        %482 = vmatprep.subr.mxu0 0.0
        %483 = vmatpush1.msra.mxu0 0.0
        %484 = vmatprep.subr.mxu0 0.0
        %485 = vmatpush1.msra.mxu0 0.0
        %486 = vmatprep.mubr.f32.mxu0 0.0
        %487 = vmatmul.mubr.f32.gmra.mrb[0].mxu0 %v236
        %v488 = vpop.f32.mrb[0].mxu0
        %v489 = vadd.f32 0.0, %v488
        %v490 = vpop.f32.mrb[0].mxu0
        %491 = vdwg.mxu0
        %492 = vmatprep.subr.mxu0 0.0
        %493 = vmatpush1.msra.mxu0 %v421
        %494 = vmatprep.subr.mxu0 0.0
        %495 = vmatpush1.msra.mxu0 0.0
        %496 = vmatprep.subr.mxu0 0.0
        %497 = vmatpush1.msra.mxu0 0.0
        %498 = vmatprep.subr.mxu0 0.0
        %499 = vmatpush1.msra.mxu0 0.0
        %500 = vmatprep.subr.mxu0 0.0
        %501 = vmatpush1.msra.mxu0 0.0
        %502 = vmatprep.subr.mxu0 0.0
        %503 = vmatpush1.msra.mxu0 0.0
        %504 = vmatprep.subr.mxu0 0.0
        %505 = vmatpush1.msra.mxu0 0.0
        %506 = vmatprep.subr.mxu0 0.0
        %507 = vmatpush1.msra.mxu0 0.0
        %508 = vmatprep.subr.mxu0 0.0
        %509 = vmatpush1.msra.mxu0 0.0
        %510 = vmatprep.subr.mxu0 0.0
        %511 = vmatpush1.msra.mxu0 0.0
        %512 = vmatprep.subr.mxu0 0.0
        %513 = vmatpush1.msra.mxu0 0.0
        %514 = vmatprep.subr.mxu0 0.0
        %515 = vmatpush1.msra.mxu0 0.0
        %516 = vmatprep.subr.mxu0 0.0
        %517 = vmatpush1.msra.mxu0 0.0
        %518 = vmatprep.subr.mxu0 0.0
        %519 = vmatpush1.msra.mxu0 0.0
        %520 = vmatprep.subr.mxu0 0.0
        %521 = vmatpush1.msra.mxu0 0.0
        %522 = vmatprep.subr.mxu0 0.0
        %523 = vmatpush1.msra.mxu0 0.0
        %524 = vmatprep.subr.mxu0 0.0
        %525 = vmatpush1.msra.mxu0 0.0
        %526 = vmatprep.subr.mxu0 0.0
        %527 = vmatpush1.msra.mxu0 0.0
        %528 = vmatprep.subr.mxu0 0.0
        %529 = vmatpush1.msra.mxu0 0.0
        %530 = vmatprep.subr.mxu0 0.0
        %531 = vmatpush1.msra.mxu0 0.0
        %532 = vmatprep.subr.mxu0 0.0
        %533 = vmatpush1.msra.mxu0 0.0
        %534 = vmatprep.subr.mxu0 0.0
        %535 = vmatpush1.msra.mxu0 0.0
        %536 = vmatprep.subr.mxu0 0.0
        %537 = vmatpush1.msra.mxu0 0.0
        %538 = vmatprep.subr.mxu0 0.0
        %539 = vmatpush1.msra.mxu0 0.0
        %540 = vmatprep.subr.mxu0 0.0
        %541 = vmatpush1.msra.mxu0 0.0
        %542 = vmatprep.subr.mxu0 0.0
        %543 = vmatpush1.msra.mxu0 0.0
        %544 = vmatprep.subr.mxu0 0.0
        %545 = vmatpush1.msra.mxu0 0.0
        %546 = vmatprep.subr.mxu0 0.0
        %547 = vmatpush1.msra.mxu0 0.0
        %548 = vmatprep.subr.mxu0 0.0
        %549 = vmatpush1.msra.mxu0 0.0
        %550 = vmatprep.subr.mxu0 0.0
        %551 = vmatpush1.msra.mxu0 0.0
        %552 = vmatprep.subr.mxu0 0.0
        %553 = vmatpush1.msra.mxu0 0.0
        %554 = vmatprep.subr.mxu0 0.0
        %555 = vmatpush1.msra.mxu0 0.0
        %556 = vmatprep.mubr.f32.mxu0 0.0
        %557 = vmatmul.mubr.f32.gmra.mrb[0].mxu0 %v236
        %v558 = vpop.f32.mrb[0].mxu0
        %v559 = vadd.f32 0.0, %v558
        %v560 = vpop.f32.mrb[0].mxu0
        %561 = vdwg.mxu0
        %v562 = vsel %vm378, %v489, 0.0
        %563 = vadd.xlane.f32.xlu0 %v562
        %v564 = vpop.xlane.xlu0 %563
        %v565 = vsel %vm378, %v559, 0.0
        %566 = vadd.xlane.f32.xlu0 %v565
        %v567 = vpop.xlane.xlu0 %566
        %v568 = vmul.f32 %v564, %v385
        %v569 = vmul.f32 %v567, %v385
        %v570 = vsub.f32 %v489, %v568
        %v571 = vsub.f32 %v559, %v569
        %v572 = vmul.f32 %v570, %v570
        %v573 = vmul.f32 %v571, %v571
        %v574 = vsel %vm378, %v572, 0.0
        %575 = vadd.xlane.f32.xlu0 %v574
        %v576 = vpop.xlane.xlu0 %575
        %v577 = vsel %vm378, %v573, 0.0
        %578 = vadd.xlane.f32.xlu0 %v577
        %v579 = vpop.xlane.xlu0 %578
        %v580 = vmul.f32 %v576, %v385
        %v581 = vmul.f32 %v579, %v385
        %v582 = vadd.f32 %v580, 1e-12
        %v583 = vadd.f32 %v581, 1e-12
        %v584 = vrsqrt.pop %v582
        %v585 = vrsqrt.pop %v583
        %v586 = vmul.f32 %v570, %v584
        %v587 = vmul.f32 %v571, %v585
        %v588 = vld [vmem:[%s2 + $0x1] sm:$0x1]
        %v589 = vld [vmem:[%s3 + $0x1] sm:$0x1]
        %v590 = vlaneseq
        %v591 = vshrl.u32 %v590, 7
        %v592 = vsub.s32 0, %v591
        %v593 = vrot.slane %v588, %v592
        %v594 = vmul.f32 %v586, %v593
        %v595 = vmul.f32 %v587, %v593
        %v596 = vlaneseq
        %v597 = vshrl.u32 %v596, 7
        %v598 = vsub.s32 0, %v597
        %v599 = vrot.slane %v589, %v598
        %v600 = vadd.f32 %v594, %v599
        %v601 = vadd.f32 %v595, %v599
        %v602 = vadd.f32 %v600, %v420
        %v603 = vadd.f32 %v601, %v421
        %604 = vst.msk [vmem:[%s228] sm:$0xff] %vm378, %v602
        %605 = vst.msk [vmem:[%s228 + $0x8] sm:$0xff] %vm378, %v603
        %s606 = sand.u32 %s119, 1
        %s607 = scalar_lea.sflag [#allocation4], %s606
        %s608 = sand.u32 %s119, 1
        %s609 = smul.addr %s608, 16
        %s610 = scalar_lea.vmem [#allocation7], %s609
        // Predicated region
        $region45: #{tpu_custom_call.1} parent=35 // pred_check
          %p611 = pneg %p129
        $region46: #{tpu_custom_call.1} parent=35 // pred_check_branch
          %613 = sbr.rel (%p611) target = $region48
        $region47: #{tpu_custom_call.1} parent=35 // pred_region
          %s614 = smul.u32 2, %s22
          %s616 = ssub.s32 256, 256
          %617 = vsyncadd %s607, %s616
          %s618 = smul.addr %s614, 128
          %s619 = scalar_lea.hbm %s4, %s618
          %s620 = sshll.u32 %s610, 4
          %s621 = int_to_ptr.vmem [resolvable:$true] %s620
          %626 = dma.vmem_to_hbm [thread:$0]  %s621, 256, %s619, %s607, 128, 128, 8
        $region48: #{tpu_custom_call.1} parent=35 // pred_fallthru
          _
      $region36: #{tpu_custom_call.1} parent=5 // pred_fallthru
        _
      %p627 = scmp.le.s32.totalorder 2, %s17
      // Predicated region
      $region49: #{tpu_custom_call.1} parent=5 // pred_check
        %p628 = pneg %p627
      $region50: #{tpu_custom_call.1} parent=5 // pred_check_branch
        %630 = sbr.rel (%p628) target = $region52
      $region51: #{tpu_custom_call.1} parent=5 // pred_region
        %s631 = ssub.s32 %s17, 2
        // Predicated region
        $region53: #{tpu_custom_call.1} parent=51 // pred_check
          %p632 = pneg %p135
        $region54: #{tpu_custom_call.1} parent=51 // pred_check_branch
          %634 = sbr.rel (%p632) target = $region56
        $region55: #{tpu_custom_call.1} parent=51 // pred_region
          %s635 = sand.u32 %s120, 1
          %s636 = scalar_lea.sflag [#allocation4], %s635
          %s637 = sand.u32 %s120, 1
          %s638 = smul.addr %s637, 16
          %s639 = scalar_lea.vmem [#allocation7], %s638
          %640 = dma.done %s636, 256
        $region56: #{tpu_custom_call.1} parent=51 // pred_fallthru
          _
      $region52: #{tpu_custom_call.1} parent=5 // pred_fallthru
        _
    $region6: #{tpu_custom_call.1} parent=1 // loop_footer
      %s21 = sadd.s32 1, %s17
    $region7: #{tpu_custom_call.1} parent=1 // loop_footer_branch
      %16 = sbr.rel target = $region3
    $region8: #{tpu_custom_call.1} parent=1 // loop_exit
      _
    %641 = vsyncpa [#allocation3], 1
    %s642 = scalar_lea.sflag [#allocation3], 1
    %643 = vsyncpa %s642, 1
    %644 = vsyncpa [#allocation6], 1
    %s645 = scalar_lea.sflag [#allocation6], 1
    %646 = vsyncpa %s645, 1
    %647 = vsyncpa [#allocation4], 1
    %s648 = scalar_lea.sflag [#allocation4], 1
    %649 = vsyncpa %s648, 1

</llo_original>
